<compile_context>
chip_gen: v5e
topology: v5e:2x2
jax: 0.10.0
libtpu: 0.0.40
codegen_flags: <defaults>
</compile_context>

<pallas_src>
import jax
import jax.numpy as jnp
from jax.experimental import pallas as pl
from jax.experimental.pallas import tpu as pltpu

CIN, COUT, S = 3, 8, 16          # conv in/out channels, spatial size
K9 = CIN * 9                     # 27 im2col taps
KPAD = 32                        # contraction padded to 32 (slot 27 = bias)


# ---------------------------------------------------------------------------
# Fused kernel: conv(+bias) as one matmul -> per-channel square matmul + add
# ---------------------------------------------------------------------------
def fused_conv_mm_add_kernel(w_ref, p_ref, inp_ref, o_ref):
    """Single invocation; everything stays in VMEM / registers.

    w_ref   : (COUT*S, KPAD*S) bf16  kron(conv weights + bias column, I_S)
    p_ref   : (KPAD*S, S)      bf16  im2col patches, row index = k*S + i
    inp_ref : (COUT, S, S)     f32   residual input
    o_ref   : (COUT, S, S)     f32   output
    """
    # Stage 1: 3x3 "same" conv (+bias) as ONE MXU matmul.  The kron-expanded
    # weights make the result land directly in (c*S + i, j) layout, so the
    # per-channel (S, S) operands below are plain static slices of a value.
    v1 = jnp.dot(w_ref[...], p_ref[...],
                 preferred_element_type=jnp.float32)           # (COUT*S, S) f32
    v1b = v1.astype(jnp.bfloat16)

    # Stage 2: per-channel square matmul + residual, unrolled over 8 channels.
    for c in range(COUT):
        vc = v1b[c * S:(c + 1) * S, :]                         # (S, S)
        o_ref[c] = (jnp.dot(vc, vc, preferred_element_type=jnp.float32)
                    + inp_ref[c])


# ---------------------------------------------------------------------------
# Wrapper
# ---------------------------------------------------------------------------
def model_forward(x, inp, conv_w, conv_b):
    """x: (1, CIN, S, S), inp: (1, COUT, S, S) -> (1, COUT, S, S)."""
    N, Cin, H, W = x.shape
    Cout = conv_w.shape[0]
    assert N == 1 and Cin == CIN and Cout == COUT and H == S and W == S

    # --- im2col patches in (KPAD*S, S) layout (row = k*S + i), bias tap at
    #     k = 27 (all ones). No transpose needed. --------------------------
    xpad = jnp.pad(x[0], ((0, 0), (1, 1), (1, 1)))             # (CIN, S+2, S+2)
    cols = jnp.stack(
        [xpad[:, kh:kh + S, kw:kw + S] for kh in range(3) for kw in range(3)],
        axis=1)                                                # (CIN, 9, S, S)
    patches = cols.reshape(K9, S, S)                           # (27, S, S)
    patches = jnp.concatenate(
        [patches,
         jnp.ones((1, S, S), jnp.float32),                     # bias tap
         jnp.zeros((KPAD - K9 - 1, S, S), jnp.float32)],
        axis=0)                                                # (32, S, S)
    p2 = patches.reshape(KPAD * S, S).astype(jnp.bfloat16)     # (512, 16)

    # --- conv weights (+bias column) kron-expanded with I_S so the stage-1
    #     matmul output is already (c*S+i, j). ----------------------------
    w2d = conv_w.reshape(Cout, K9)                             # (8, 27)
    wb = jnp.concatenate(
        [w2d, conv_b[:, None],
         jnp.zeros((Cout, KPAD - K9 - 1), jnp.float32)],
        axis=1)                                                # (8, 32)
    wkron = jnp.einsum('ck,ij->cikj', wb, jnp.eye(S, dtype=jnp.float32))
    wkron = wkron.reshape(Cout * S, KPAD * S).astype(jnp.bfloat16)  # (128, 512)

    inp3d = inp[0]                                             # (8, 16, 16)

    vmem = lambda: pl.BlockSpec(memory_space=pltpu.MemorySpace.VMEM)
    flops = 2 * (Cout * S) * (KPAD * S) * S + Cout * 2 * S * S * S
    bytes_accessed = (wkron.size + p2.size) * 2 + (inp3d.size + Cout * S * S) * 4

    out = pl.pallas_call(
        fused_conv_mm_add_kernel,
        out_shape=jax.ShapeDtypeStruct((Cout, S, S), jnp.float32),
        in_specs=[vmem(), vmem(), vmem()],
        out_specs=vmem(),
        cost_estimate=pl.CostEstimate(
            flops=flops, transcendentals=0, bytes_accessed=bytes_accessed),
        compiler_params=pltpu.CompilerParams(
            allow_input_fusion=[True, True, True]),
    )(wkron, p2, inp3d)                                        # (COUT, S, S)

    return out[None]                                           # (1, COUT, S, S)


# ---------------------------------------------------------------------------
# Main
# ---------------------------------------------------------------------------
if __name__ == "__main__":
    key = jax.random.PRNGKey(0)
    k_x, k_inp, k_w, k_b = jax.random.split(key, 4)

    x = jax.random.normal(k_x, (1, CIN, S, S), dtype=jnp.float32)
    inp = jax.random.normal(k_inp, (1, COUT, S, S), dtype=jnp.float32)

    fan_in = CIN * 3 * 3
    conv_w = jax.random.normal(k_w, (COUT, CIN, 3, 3), dtype=jnp.float32)
    conv_w = conv_w * (1.0 / jnp.sqrt(fan_in))
    conv_b = jax.random.normal(k_b, (COUT,), dtype=jnp.float32) * 0.01

    out = jax.jit(model_forward)(x, inp, conv_w, conv_b)
    jax.block_until_ready(out)
    assert out.shape == (1, COUT, S, S) and out.dtype == jnp.float32

    # Pure-JAX reference (high precision) for a sanity check.
    v1_ref = jax.lax.conv_general_dilated(
        x, conv_w, window_strides=(1, 1), padding=((1, 1), (1, 1)),
        dimension_numbers=("NCHW", "OIHW", "NCHW"),
        precision=jax.lax.Precision.HIGHEST,
    ) + conv_b[None, :, None, None]
    ref = jnp.einsum("cij,cjk->cik", v1_ref[0], v1_ref[0],
                     precision=jax.lax.Precision.HIGHEST) + inp[0]
    assert jnp.allclose(out[0], ref, rtol=5e-2, atol=5e-1), "mismatch vs reference"

    print("KERNEL_OK")
</pallas_src>

<mosaic_0001>
module attributes {stable_mosaic.version = 11 : i64} {
  func.func @fused_conv_mm_add_kernel(%arg0: memref<128x512xbf16, #tpu.memory_space<vmem>>, %arg1: memref<512x16xbf16, #tpu.memory_space<vmem>>, %arg2: memref<8x16x16xf32, #tpu.memory_space<vmem>>, %arg3: memref<8x16x16xf32, #tpu.memory_space<vmem>>) attributes {dimension_semantics = [], scalar_prefetch = 0 : i64, scratch_operands = 0 : i64, tpu.core_type = #tpu.core_type<tc>} {
    %c0 = arith.constant 0 : index
    %c0_0 = arith.constant 0 : index
    %0 = vector.load %arg0[%c0, %c0_0] : memref<128x512xbf16, #tpu.memory_space<vmem>>, vector<128x512xbf16>
    %c0_1 = arith.constant 0 : index
    %c0_2 = arith.constant 0 : index
    %1 = vector.load %arg1[%c0_1, %c0_2] : memref<512x16xbf16, #tpu.memory_space<vmem>>, vector<512x16xbf16>
    %cst = arith.constant dense<0.000000e+00> : vector<128x16xf32>
    %2 = tpu.matmul %0, %1, %cst {dimension_numbers = #tpu.dot_dimension_numbers<[1], [0], [0], [1], [0, 0, 1, 1], [], []>} : vector<128x512xbf16>, vector<512x16xbf16>, vector<128x16xf32> -> vector<128x16xf32>
    %3 = arith.truncf %2 : vector<128x16xf32> to vector<128x16xbf16>
    %4 = vector.extract_strided_slice %3 {offsets = [0, 0], sizes = [16, 16], strides = [1, 1]} : vector<128x16xbf16> to vector<16x16xbf16>
    %cst_3 = arith.constant dense<0.000000e+00> : vector<16x16xf32>
    %5 = tpu.matmul %4, %4, %cst_3 {dimension_numbers = #tpu.dot_dimension_numbers<[1], [0], [0], [1], [0, 0, 1, 1], [], []>} : vector<16x16xbf16>, vector<16x16xbf16>, vector<16x16xf32> -> vector<16x16xf32>
    %c0_4 = arith.constant 0 : index
    %c0_5 = arith.constant 0 : index
    %c0_6 = arith.constant 0 : index
    %6 = vector.load %arg2[%c0_4, %c0_5, %c0_6] : memref<8x16x16xf32, #tpu.memory_space<vmem>>, vector<1x16x16xf32>
    %7 = vector.shape_cast %6 : vector<1x16x16xf32> to vector<16x16xf32>
    %8 = arith.addf %5, %7 : vector<16x16xf32>
    %c0_7 = arith.constant 0 : index
    %c0_8 = arith.constant 0 : index
    %c0_9 = arith.constant 0 : index
    %9 = vector.load %arg3[%c0_7, %c0_8, %c0_9] : memref<8x16x16xf32, #tpu.memory_space<vmem>>, vector<1x16x16xf32>
    %10 = vector.shape_cast %9 : vector<1x16x16xf32> to vector<16x16xf32>
    %11 = vector.shape_cast %8 : vector<16x16xf32> to vector<1x16x16xf32>
    tpu.vector_store %arg3[%c0_7, %c0_8, %c0_9], %11 {strides = array<i32>} : memref<8x16x16xf32, #tpu.memory_space<vmem>>, vector<1x16x16xf32>,
    %12 = vector.extract_strided_slice %3 {offsets = [16, 0], sizes = [16, 16], strides = [1, 1]} : vector<128x16xbf16> to vector<16x16xbf16>
    %cst_10 = arith.constant dense<0.000000e+00> : vector<16x16xf32>
    %13 = tpu.matmul %12, %12, %cst_10 {dimension_numbers = #tpu.dot_dimension_numbers<[1], [0], [0], [1], [0, 0, 1, 1], [], []>} : vector<16x16xbf16>, vector<16x16xbf16>, vector<16x16xf32> -> vector<16x16xf32>
    %c1 = arith.constant 1 : index
    %c0_11 = arith.constant 0 : index
    %c0_12 = arith.constant 0 : index
    %14 = vector.load %arg2[%c1, %c0_11, %c0_12] : memref<8x16x16xf32, #tpu.memory_space<vmem>>, vector<1x16x16xf32>
    %15 = vector.shape_cast %14 : vector<1x16x16xf32> to vector<16x16xf32>
    %16 = arith.addf %13, %15 : vector<16x16xf32>
    %c1_13 = arith.constant 1 : index
    %c0_14 = arith.constant 0 : index
    %c0_15 = arith.constant 0 : index
    %17 = vector.load %arg3[%c1_13, %c0_14, %c0_15] : memref<8x16x16xf32, #tpu.memory_space<vmem>>, vector<1x16x16xf32>
    %18 = vector.shape_cast %17 : vector<1x16x16xf32> to vector<16x16xf32>
    %19 = vector.shape_cast %16 : vector<16x16xf32> to vector<1x16x16xf32>
    tpu.vector_store %arg3[%c1_13, %c0_14, %c0_15], %19 {strides = array<i32>} : memref<8x16x16xf32, #tpu.memory_space<vmem>>, vector<1x16x16xf32>,
    %20 = vector.extract_strided_slice %3 {offsets = [32, 0], sizes = [16, 16], strides = [1, 1]} : vector<128x16xbf16> to vector<16x16xbf16>
    %cst_16 = arith.constant dense<0.000000e+00> : vector<16x16xf32>
    %21 = tpu.matmul %20, %20, %cst_16 {dimension_numbers = #tpu.dot_dimension_numbers<[1], [0], [0], [1], [0, 0, 1, 1], [], []>} : vector<16x16xbf16>, vector<16x16xbf16>, vector<16x16xf32> -> vector<16x16xf32>
    %c2 = arith.constant 2 : index
    %c0_17 = arith.constant 0 : index
    %c0_18 = arith.constant 0 : index
    %22 = vector.load %arg2[%c2, %c0_17, %c0_18] : memref<8x16x16xf32, #tpu.memory_space<vmem>>, vector<1x16x16xf32>
    %23 = vector.shape_cast %22 : vector<1x16x16xf32> to vector<16x16xf32>
    %24 = arith.addf %21, %23 : vector<16x16xf32>
    %c2_19 = arith.constant 2 : index
    %c0_20 = arith.constant 0 : index
    %c0_21 = arith.constant 0 : index
    %25 = vector.load %arg3[%c2_19, %c0_20, %c0_21] : memref<8x16x16xf32, #tpu.memory_space<vmem>>, vector<1x16x16xf32>
    %26 = vector.shape_cast %25 : vector<1x16x16xf32> to vector<16x16xf32>
    %27 = vector.shape_cast %24 : vector<16x16xf32> to vector<1x16x16xf32>
    tpu.vector_store %arg3[%c2_19, %c0_20, %c0_21], %27 {strides = array<i32>} : memref<8x16x16xf32, #tpu.memory_space<vmem>>, vector<1x16x16xf32>,
    %28 = vector.extract_strided_slice %3 {offsets = [48, 0], sizes = [16, 16], strides = [1, 1]} : vector<128x16xbf16> to vector<16x16xbf16>
    %cst_22 = arith.constant dense<0.000000e+00> : vector<16x16xf32>
    %29 = tpu.matmul %28, %28, %cst_22 {dimension_numbers = #tpu.dot_dimension_numbers<[1], [0], [0], [1], [0, 0, 1, 1], [], []>} : vector<16x16xbf16>, vector<16x16xbf16>, vector<16x16xf32> -> vector<16x16xf32>
    %c3 = arith.constant 3 : index
    %c0_23 = arith.constant 0 : index
    %c0_24 = arith.constant 0 : index
    %30 = vector.load %arg2[%c3, %c0_23, %c0_24] : memref<8x16x16xf32, #tpu.memory_space<vmem>>, vector<1x16x16xf32>
    %31 = vector.shape_cast %30 : vector<1x16x16xf32> to vector<16x16xf32>
    %32 = arith.addf %29, %31 : vector<16x16xf32>
    %c3_25 = arith.constant 3 : index
    %c0_26 = arith.constant 0 : index
    %c0_27 = arith.constant 0 : index
    %33 = vector.load %arg3[%c3_25, %c0_26, %c0_27] : memref<8x16x16xf32, #tpu.memory_space<vmem>>, vector<1x16x16xf32>
    %34 = vector.shape_cast %33 : vector<1x16x16xf32> to vector<16x16xf32>
    %35 = vector.shape_cast %32 : vector<16x16xf32> to vector<1x16x16xf32>
    tpu.vector_store %arg3[%c3_25, %c0_26, %c0_27], %35 {strides = array<i32>} : memref<8x16x16xf32, #tpu.memory_space<vmem>>, vector<1x16x16xf32>,
    %36 = vector.extract_strided_slice %3 {offsets = [64, 0], sizes = [16, 16], strides = [1, 1]} : vector<128x16xbf16> to vector<16x16xbf16>
    %cst_28 = arith.constant dense<0.000000e+00> : vector<16x16xf32>
    %37 = tpu.matmul %36, %36, %cst_28 {dimension_numbers = #tpu.dot_dimension_numbers<[1], [0], [0], [1], [0, 0, 1, 1], [], []>} : vector<16x16xbf16>, vector<16x16xbf16>, vector<16x16xf32> -> vector<16x16xf32>
    %c4 = arith.constant 4 : index
    %c0_29 = arith.constant 0 : index
    %c0_30 = arith.constant 0 : index
    %38 = vector.load %arg2[%c4, %c0_29, %c0_30] : memref<8x16x16xf32, #tpu.memory_space<vmem>>, vector<1x16x16xf32>
    %39 = vector.shape_cast %38 : vector<1x16x16xf32> to vector<16x16xf32>
    %40 = arith.addf %37, %39 : vector<16x16xf32>
    %c4_31 = arith.constant 4 : index
    %c0_32 = arith.constant 0 : index
    %c0_33 = arith.constant 0 : index
    %41 = vector.load %arg3[%c4_31, %c0_32, %c0_33] : memref<8x16x16xf32, #tpu.memory_space<vmem>>, vector<1x16x16xf32>
    %42 = vector.shape_cast %41 : vector<1x16x16xf32> to vector<16x16xf32>
    %43 = vector.shape_cast %40 : vector<16x16xf32> to vector<1x16x16xf32>
    tpu.vector_store %arg3[%c4_31, %c0_32, %c0_33], %43 {strides = array<i32>} : memref<8x16x16xf32, #tpu.memory_space<vmem>>, vector<1x16x16xf32>,
    %44 = vector.extract_strided_slice %3 {offsets = [80, 0], sizes = [16, 16], strides = [1, 1]} : vector<128x16xbf16> to vector<16x16xbf16>
    %cst_34 = arith.constant dense<0.000000e+00> : vector<16x16xf32>
    %45 = tpu.matmul %44, %44, %cst_34 {dimension_numbers = #tpu.dot_dimension_numbers<[1], [0], [0], [1], [0, 0, 1, 1], [], []>} : vector<16x16xbf16>, vector<16x16xbf16>, vector<16x16xf32> -> vector<16x16xf32>
    %c5 = arith.constant 5 : index
    %c0_35 = arith.constant 0 : index
    %c0_36 = arith.constant 0 : index
    %46 = vector.load %arg2[%c5, %c0_35, %c0_36] : memref<8x16x16xf32, #tpu.memory_space<vmem>>, vector<1x16x16xf32>
    %47 = vector.shape_cast %46 : vector<1x16x16xf32> to vector<16x16xf32>
    %48 = arith.addf %45, %47 : vector<16x16xf32>
    %c5_37 = arith.constant 5 : index
    %c0_38 = arith.constant 0 : index
    %c0_39 = arith.constant 0 : index
    %49 = vector.load %arg3[%c5_37, %c0_38, %c0_39] : memref<8x16x16xf32, #tpu.memory_space<vmem>>, vector<1x16x16xf32>
    %50 = vector.shape_cast %49 : vector<1x16x16xf32> to vector<16x16xf32>
    %51 = vector.shape_cast %48 : vector<16x16xf32> to vector<1x16x16xf32>
    tpu.vector_store %arg3[%c5_37, %c0_38, %c0_39], %51 {strides = array<i32>} : memref<8x16x16xf32, #tpu.memory_space<vmem>>, vector<1x16x16xf32>,
    %52 = vector.extract_strided_slice %3 {offsets = [96, 0], sizes = [16, 16], strides = [1, 1]} : vector<128x16xbf16> to vector<16x16xbf16>
    %cst_40 = arith.constant dense<0.000000e+00> : vector<16x16xf32>
    %53 = tpu.matmul %52, %52, %cst_40 {dimension_numbers = #tpu.dot_dimension_numbers<[1], [0], [0], [1], [0, 0, 1, 1], [], []>} : vector<16x16xbf16>, vector<16x16xbf16>, vector<16x16xf32> -> vector<16x16xf32>
    %c6 = arith.constant 6 : index
    %c0_41 = arith.constant 0 : index
    %c0_42 = arith.constant 0 : index
    %54 = vector.load %arg2[%c6, %c0_41, %c0_42] : memref<8x16x16xf32, #tpu.memory_space<vmem>>, vector<1x16x16xf32>
    %55 = vector.shape_cast %54 : vector<1x16x16xf32> to vector<16x16xf32>
    %56 = arith.addf %53, %55 : vector<16x16xf32>
    %c6_43 = arith.constant 6 : index
    %c0_44 = arith.constant 0 : index
    %c0_45 = arith.constant 0 : index
    %57 = vector.load %arg3[%c6_43, %c0_44, %c0_45] : memref<8x16x16xf32, #tpu.memory_space<vmem>>, vector<1x16x16xf32>
    %58 = vector.shape_cast %57 : vector<1x16x16xf32> to vector<16x16xf32>
    %59 = vector.shape_cast %56 : vector<16x16xf32> to vector<1x16x16xf32>
    tpu.vector_store %arg3[%c6_43, %c0_44, %c0_45], %59 {strides = array<i32>} : memref<8x16x16xf32, #tpu.memory_space<vmem>>, vector<1x16x16xf32>,
    %60 = vector.extract_strided_slice %3 {offsets = [112, 0], sizes = [16, 16], strides = [1, 1]} : vector<128x16xbf16> to vector<16x16xbf16>
    %cst_46 = arith.constant dense<0.000000e+00> : vector<16x16xf32>
    %61 = tpu.matmul %60, %60, %cst_46 {dimension_numbers = #tpu.dot_dimension_numbers<[1], [0], [0], [1], [0, 0, 1, 1], [], []>} : vector<16x16xbf16>, vector<16x16xbf16>, vector<16x16xf32> -> vector<16x16xf32>
    %c7 = arith.constant 7 : index
    %c0_47 = arith.constant 0 : index
    %c0_48 = arith.constant 0 : index
    %62 = vector.load %arg2[%c7, %c0_47, %c0_48] : memref<8x16x16xf32, #tpu.memory_space<vmem>>, vector<1x16x16xf32>
    %63 = vector.shape_cast %62 : vector<1x16x16xf32> to vector<16x16xf32>
    %64 = arith.addf %61, %63 : vector<16x16xf32>
    %c7_49 = arith.constant 7 : index
    %c0_50 = arith.constant 0 : index
    %c0_51 = arith.constant 0 : index
    %65 = vector.load %arg3[%c7_49, %c0_50, %c0_51] : memref<8x16x16xf32, #tpu.memory_space<vmem>>, vector<1x16x16xf32>
    %66 = vector.shape_cast %65 : vector<1x16x16xf32> to vector<16x16xf32>
    %67 = vector.shape_cast %64 : vector<16x16xf32> to vector<1x16x16xf32>
    tpu.vector_store %arg3[%c7_49, %c0_50, %c0_51], %67 {strides = array<i32>} : memref<8x16x16xf32, #tpu.memory_space<vmem>>, vector<1x16x16xf32>,
    return
  }
}

</mosaic_0001>

<llo_original>
// kernel: model_forward.2
$region0: #{model_forward.2}
  #allocation0 [shape = 'u32[]', space=smem, size = 0x4, offset = 0x4, fixed_abs, tag = 'smem constant byte address 0x4 - core index']
  #allocation1 [shape = 'u32[72,128]{1,0:T(1,128)}', space=vmem, size = 0x9000, scoped, tag = 'internal scratch']
  %s0 = inlined_call_operand.vmem [shape: bf16[128,512], index: 0, kind: input, shape index: {}]
  %s1 = inlined_call_operand.vmem [shape: bf16[512,16], index: 1, kind: input, shape index: {}]
  %s2 = inlined_call_operand.vmem [shape: f32[1,8,16,16], index: 2, kind: input, shape index: {}]
  %s3 = inlined_call_operand.hbm [shape: f32[8,16,16], index: 3, kind: output, shape index: {}]
  %s4 = sld [smem:[#allocation0]]
  $region22: #{model_forward.2} parent=0
    _
  %s6 = ssub.s32 1, %s4
  %s7 = scalar_select 0, %s6, %s4
  $region1: #{model_forward.2} parent=0
    #allocation2 [shape = 'u8[65536]{0}', space=vmem, size = 0x10000, scoped, tag = 'output window, operand 0, single buffered']
    #allocation3 [shape = 's32[1]{0}', space=sflag, size = 0x4, scoped, tag = 'scoped memory for model_forward.2']
    #allocation4 [shape = 'u8[65536]{0}', space=vmem, size = 0x10000, dematerialized = true, scoped, tag = 'FusionAdapter Buffer %fusion.2 = f32[8,16,16]{2,1,0:T(8,128)} fusion(%param_2.5), kind=kLoop, calls=%fused_computation.4.clone, metadata={op_name="jit(model_forward)/squeeze" stack_frame_id=23}']
    %8 = vsyncpa [#allocation3], 0
    // Predicated region
    $region2: #{model_forward.2} parent=1 // pred_check
      _
    $region3: #{model_forward.2} parent=1 // pred_check_branch
      %10 = sbr.rel (0) target = $region5
    $region4: #{model_forward.2} parent=1 // pred_region
      _
    $region5: #{model_forward.2} parent=1 // pred_fallthru
      _
    // Predicated region
    $region6: #{model_forward.2} parent=1 // pred_check
      _
    $region7: #{model_forward.2} parent=1 // pred_check_branch
      %12 = sbr.rel (0) target = $region9
    $region8: #{model_forward.2} parent=1 // pred_region
      _
    $region9: #{model_forward.2} parent=1 // pred_fallthru
      _
    // Predicated region
    $region10: #{model_forward.2} parent=1 // pred_check
      _
    $region11: #{model_forward.2} parent=1 // pred_check_branch
      %14 = sbr.rel (0) target = $region13
    $region12: #{model_forward.2} parent=1 // pred_region
      _
    $region13: #{model_forward.2} parent=1 // pred_fallthru
      _
    %v15 = vld [vmem:[%s2] sm:$0xff]
    %s17 = ssub.s32 256, 1
    %18 = vst [vmem:[#allocation4] sm:%s17] %v15
    %s19 = scalar_lea.vmem %s2, 8
    %v20 = vld [vmem:[%s19] sm:$0xff]
    %s21 = scalar_lea.vmem [#allocation4], 8
    %s23 = ssub.s32 256, 1
    %24 = vst [vmem:[%s21] sm:%s23] %v20
    %s25 = scalar_lea.vmem %s2, 16
    %v26 = vld [vmem:[%s25] sm:$0xff]
    %s27 = scalar_lea.vmem [#allocation4], 16
    %s29 = ssub.s32 256, 1
    %30 = vst [vmem:[%s27] sm:%s29] %v26
    %s31 = scalar_lea.vmem %s2, 24
    %v32 = vld [vmem:[%s31] sm:$0xff]
    %s33 = scalar_lea.vmem [#allocation4], 24
    %s35 = ssub.s32 256, 1
    %36 = vst [vmem:[%s33] sm:%s35] %v32
    %s37 = scalar_lea.vmem %s2, 32
    %v38 = vld [vmem:[%s37] sm:$0xff]
    %s39 = scalar_lea.vmem [#allocation4], 32
    %s41 = ssub.s32 256, 1
    %42 = vst [vmem:[%s39] sm:%s41] %v38
    %s43 = scalar_lea.vmem %s2, 40
    %v44 = vld [vmem:[%s43] sm:$0xff]
    %s45 = scalar_lea.vmem [#allocation4], 40
    %s47 = ssub.s32 256, 1
    %48 = vst [vmem:[%s45] sm:%s47] %v44
    %s49 = scalar_lea.vmem %s2, 48
    %v50 = vld [vmem:[%s49] sm:$0xff]
    %s51 = scalar_lea.vmem [#allocation4], 48
    %s53 = ssub.s32 256, 1
    %54 = vst [vmem:[%s51] sm:%s53] %v50
    %s55 = scalar_lea.vmem %s2, 56
    %v56 = vld [vmem:[%s55] sm:$0xff]
    %s57 = scalar_lea.vmem [#allocation4], 56
    %s59 = ssub.s32 256, 1
    %60 = vst [vmem:[%s57] sm:%s59] %v56
    %s61 = scalar_lea.vmem %s2, 64
    %v62 = vld [vmem:[%s61] sm:$0xff]
    %s63 = scalar_lea.vmem [#allocation4], 64
    %s65 = ssub.s32 256, 1
    %66 = vst [vmem:[%s63] sm:%s65] %v62
    %s67 = scalar_lea.vmem %s2, 72
    %v68 = vld [vmem:[%s67] sm:$0xff]
    %s69 = scalar_lea.vmem [#allocation4], 72
    %s71 = ssub.s32 256, 1
    %72 = vst [vmem:[%s69] sm:%s71] %v68
    %s73 = scalar_lea.vmem %s2, 80
    %v74 = vld [vmem:[%s73] sm:$0xff]
    %s75 = scalar_lea.vmem [#allocation4], 80
    %s77 = ssub.s32 256, 1
    %78 = vst [vmem:[%s75] sm:%s77] %v74
    %s79 = scalar_lea.vmem %s2, 88
    %v80 = vld [vmem:[%s79] sm:$0xff]
    %s81 = scalar_lea.vmem [#allocation4], 88
    %s83 = ssub.s32 256, 1
    %84 = vst [vmem:[%s81] sm:%s83] %v80
    %s85 = scalar_lea.vmem %s2, 96
    %v86 = vld [vmem:[%s85] sm:$0xff]
    %s87 = scalar_lea.vmem [#allocation4], 96
    %s89 = ssub.s32 256, 1
    %90 = vst [vmem:[%s87] sm:%s89] %v86
    %s91 = scalar_lea.vmem %s2, 104
    %v92 = vld [vmem:[%s91] sm:$0xff]
    %s93 = scalar_lea.vmem [#allocation4], 104
    %s95 = ssub.s32 256, 1
    %96 = vst [vmem:[%s93] sm:%s95] %v92
    %s97 = scalar_lea.vmem %s2, 112
    %v98 = vld [vmem:[%s97] sm:$0xff]
    %s99 = scalar_lea.vmem [#allocation4], 112
    %s101 = ssub.s32 256, 1
    %102 = vst [vmem:[%s99] sm:%s101] %v98
    %s103 = scalar_lea.vmem %s2, 120
    %v104 = vld [vmem:[%s103] sm:$0xff]
    %s105 = scalar_lea.vmem [#allocation4], 120
    %s107 = ssub.s32 256, 1
    %108 = vst [vmem:[%s105] sm:%s107] %v104
    %v110 = vld [vmem:[%s0] sm:$0xff]
    %v111 = vld [vmem:[%s0 + $0x8] sm:$0xff]
    %v112 = vld [vmem:[%s0 + $0x10] sm:$0xff]
    %v113 = vld [vmem:[%s0 + $0x18] sm:$0xff]
    %v114 = vld [vmem:[%s0 + $0x20] sm:$0xff]
    %v115 = vld [vmem:[%s0 + $0x28] sm:$0xff]
    %v116 = vld [vmem:[%s0 + $0x30] sm:$0xff]
    %v117 = vld [vmem:[%s0 + $0x38] sm:$0xff]
    %v118 = vld [vmem:[%s0 + $0x40] sm:$0xff]
    %v119 = vld [vmem:[%s0 + $0x48] sm:$0xff]
    %v120 = vld [vmem:[%s0 + $0x50] sm:$0xff]
    %v121 = vld [vmem:[%s0 + $0x58] sm:$0xff]
    %v122 = vld [vmem:[%s0 + $0x60] sm:$0xff]
    %v123 = vld [vmem:[%s0 + $0x68] sm:$0xff]
    %v124 = vld [vmem:[%s0 + $0x70] sm:$0xff]
    %v125 = vld [vmem:[%s0 + $0x78] sm:$0xff]
    %v126 = vld [vmem:[%s0 + $0x80] sm:$0xff]
    %v127 = vld [vmem:[%s0 + $0x88] sm:$0xff]
    %v128 = vld [vmem:[%s0 + $0x90] sm:$0xff]
    %v129 = vld [vmem:[%s0 + $0x98] sm:$0xff]
    %v130 = vld [vmem:[%s0 + $0xa0] sm:$0xff]
    %v131 = vld [vmem:[%s0 + $0xa8] sm:$0xff]
    %v132 = vld [vmem:[%s0 + $0xb0] sm:$0xff]
    %v133 = vld [vmem:[%s0 + $0xb8] sm:$0xff]
    %v134 = vld [vmem:[%s0 + $0xc0] sm:$0xff]
    %v135 = vld [vmem:[%s0 + $0xc8] sm:$0xff]
    %v136 = vld [vmem:[%s0 + $0xd0] sm:$0xff]
    %v137 = vld [vmem:[%s0 + $0xd8] sm:$0xff]
    %v138 = vld [vmem:[%s0 + $0xe0] sm:$0xff]
    %v139 = vld [vmem:[%s0 + $0xe8] sm:$0xff]
    %v140 = vld [vmem:[%s0 + $0xf0] sm:$0xff]
    %v141 = vld [vmem:[%s0 + $0xf8] sm:$0xff]
    %v142 = vld [vmem:[%s1] sm:$0xf]
    %v143 = vld [vmem:[%s1 + $0x4] sm:$0xf]
    %v144 = vld [vmem:[%s1 + $0x8] sm:$0xf]
    %v145 = vld [vmem:[%s1 + $0xc] sm:$0xf]
    %v146 = vld [vmem:[%s1 + $0x10] sm:$0xf]
    %v147 = vld [vmem:[%s1 + $0x14] sm:$0xf]
    %v148 = vld [vmem:[%s1 + $0x18] sm:$0xf]
    %v149 = vld [vmem:[%s1 + $0x1c] sm:$0xf]
    %v150 = vld [vmem:[%s1 + $0x20] sm:$0xf]
    %v151 = vld [vmem:[%s1 + $0x24] sm:$0xf]
    %v152 = vld [vmem:[%s1 + $0x28] sm:$0xf]
    %v153 = vld [vmem:[%s1 + $0x2c] sm:$0xf]
    %v154 = vld [vmem:[%s1 + $0x30] sm:$0xf]
    %v155 = vld [vmem:[%s1 + $0x34] sm:$0xf]
    %v156 = vld [vmem:[%s1 + $0x38] sm:$0xf]
    %v157 = vld [vmem:[%s1 + $0x3c] sm:$0xf]
    %v158 = vld [vmem:[%s1 + $0x40] sm:$0xf]
    %v159 = vld [vmem:[%s1 + $0x44] sm:$0xf]
    %v160 = vld [vmem:[%s1 + $0x48] sm:$0xf]
    %v161 = vld [vmem:[%s1 + $0x4c] sm:$0xf]
    %v162 = vld [vmem:[%s1 + $0x50] sm:$0xf]
    %v163 = vld [vmem:[%s1 + $0x54] sm:$0xf]
    %v164 = vld [vmem:[%s1 + $0x58] sm:$0xf]
    %v165 = vld [vmem:[%s1 + $0x5c] sm:$0xf]
    %v166 = vld [vmem:[%s1 + $0x60] sm:$0xf]
    %v167 = vld [vmem:[%s1 + $0x64] sm:$0xf]
    %v168 = vld [vmem:[%s1 + $0x68] sm:$0xf]
    %v169 = vld [vmem:[%s1 + $0x6c] sm:$0xf]
    %v170 = vld [vmem:[%s1 + $0x70] sm:$0xf]
    %v171 = vld [vmem:[%s1 + $0x74] sm:$0xf]
    %v172 = vld [vmem:[%s1 + $0x78] sm:$0xf]
    %v173 = vld [vmem:[%s1 + $0x7c] sm:$0xf]
    %v174 = vld [vmem:[%s1 + $0x80] sm:$0xf]
    %v175 = vld [vmem:[%s1 + $0x84] sm:$0xf]
    %v176 = vld [vmem:[%s1 + $0x88] sm:$0xf]
    %v177 = vld [vmem:[%s1 + $0x8c] sm:$0xf]
    %v178 = vld [vmem:[%s1 + $0x90] sm:$0xf]
    %v179 = vld [vmem:[%s1 + $0x94] sm:$0xf]
    %v180 = vld [vmem:[%s1 + $0x98] sm:$0xf]
    %v181 = vld [vmem:[%s1 + $0x9c] sm:$0xf]
    %v182 = vld [vmem:[%s1 + $0xa0] sm:$0xf]
    %v183 = vld [vmem:[%s1 + $0xa4] sm:$0xf]
    %v184 = vld [vmem:[%s1 + $0xa8] sm:$0xf]
    %v185 = vld [vmem:[%s1 + $0xac] sm:$0xf]
    %v186 = vld [vmem:[%s1 + $0xb0] sm:$0xf]
    %v187 = vld [vmem:[%s1 + $0xb4] sm:$0xf]
    %v188 = vld [vmem:[%s1 + $0xb8] sm:$0xf]
    %v189 = vld [vmem:[%s1 + $0xbc] sm:$0xf]
    %v190 = vld [vmem:[%s1 + $0xc0] sm:$0xf]
    %v191 = vld [vmem:[%s1 + $0xc4] sm:$0xf]
    %v192 = vld [vmem:[%s1 + $0xc8] sm:$0xf]
    %v193 = vld [vmem:[%s1 + $0xcc] sm:$0xf]
    %v194 = vld [vmem:[%s1 + $0xd0] sm:$0xf]
    %v195 = vld [vmem:[%s1 + $0xd4] sm:$0xf]
    %v196 = vld [vmem:[%s1 + $0xd8] sm:$0xf]
    %v197 = vld [vmem:[%s1 + $0xdc] sm:$0xf]
    %v198 = vld [vmem:[%s1 + $0xe0] sm:$0xf]
    %v199 = vld [vmem:[%s1 + $0xe4] sm:$0xf]
    %v200 = vld [vmem:[%s1 + $0xe8] sm:$0xf]
    %v201 = vld [vmem:[%s1 + $0xec] sm:$0xf]
    %v202 = vld [vmem:[%s1 + $0xf0] sm:$0xf]
    %v203 = vld [vmem:[%s1 + $0xf4] sm:$0xf]
    %v204 = vld [vmem:[%s1 + $0xf8] sm:$0xf]
    %v205 = vld [vmem:[%s1 + $0xfc] sm:$0xf]
    %v238 = vunpack.c.l.b16 %v110
    %v239 = vunpack.c.h.b16 %v110
    %v240 = vunpack.c.l.b16 %v111
    %v241 = vunpack.c.h.b16 %v111
    %v242 = vunpack.c.l.b16 %v112
    %v243 = vunpack.c.h.b16 %v112
    %v244 = vunpack.c.l.b16 %v113
    %v245 = vunpack.c.h.b16 %v113
    %v246 = vunpack.c.l.b16 %v114
    %v247 = vunpack.c.h.b16 %v114
    %v248 = vunpack.c.l.b16 %v115
    %v249 = vunpack.c.h.b16 %v115
    %v250 = vunpack.c.l.b16 %v116
    %v251 = vunpack.c.h.b16 %v116
    %v252 = vunpack.c.l.b16 %v117
    %v253 = vunpack.c.h.b16 %v117
    %v254 = vunpack.c.l.b16 %v118
    %v255 = vunpack.c.h.b16 %v118
    %v256 = vunpack.c.l.b16 %v119
    %v257 = vunpack.c.h.b16 %v119
    %v258 = vunpack.c.l.b16 %v120
    %v259 = vunpack.c.h.b16 %v120
    %v260 = vunpack.c.l.b16 %v121
    %v261 = vunpack.c.h.b16 %v121
    %v262 = vunpack.c.l.b16 %v122
    %v263 = vunpack.c.h.b16 %v122
    %v264 = vunpack.c.l.b16 %v123
    %v265 = vunpack.c.h.b16 %v123
    %v266 = vunpack.c.l.b16 %v124
    %v267 = vunpack.c.h.b16 %v124
    %v268 = vunpack.c.l.b16 %v125
    %v269 = vunpack.c.h.b16 %v125
    %v270 = vunpack.c.l.b16 %v126
    %v271 = vunpack.c.h.b16 %v126
    %v272 = vunpack.c.l.b16 %v127
    %v273 = vunpack.c.h.b16 %v127
    %v274 = vunpack.c.l.b16 %v128
    %v275 = vunpack.c.h.b16 %v128
    %v276 = vunpack.c.l.b16 %v129
    %v277 = vunpack.c.h.b16 %v129
    %v278 = vunpack.c.l.b16 %v130
    %v279 = vunpack.c.h.b16 %v130
    %v280 = vunpack.c.l.b16 %v131
    %v281 = vunpack.c.h.b16 %v131
    %v282 = vunpack.c.l.b16 %v132
    %v283 = vunpack.c.h.b16 %v132
    %v284 = vunpack.c.l.b16 %v133
    %v285 = vunpack.c.h.b16 %v133
    %v286 = vunpack.c.l.b16 %v134
    %v287 = vunpack.c.h.b16 %v134
    %v288 = vunpack.c.l.b16 %v135
    %v289 = vunpack.c.h.b16 %v135
    %v290 = vunpack.c.l.b16 %v136
    %v291 = vunpack.c.h.b16 %v136
    %v292 = vunpack.c.l.b16 %v137
    %v293 = vunpack.c.h.b16 %v137
    %v294 = vunpack.c.l.b16 %v138
    %v295 = vunpack.c.h.b16 %v138
    %v296 = vunpack.c.l.b16 %v139
    %v297 = vunpack.c.h.b16 %v139
    %v298 = vunpack.c.l.b16 %v140
    %v299 = vunpack.c.h.b16 %v140
    %v300 = vunpack.c.l.b16 %v141
    %v301 = vunpack.c.h.b16 %v141
    %v302 = vpack.c.b16 %v242, %v238
    %v303 = vpack.c.b16 %v243, %v239
    %v304 = vpack.c.b16 %v244, %v240
    %v305 = vpack.c.b16 %v245, %v241
    %v306 = vpack.c.b16 %v250, %v246
    %v307 = vpack.c.b16 %v251, %v247
    %v308 = vpack.c.b16 %v252, %v248
    %v309 = vpack.c.b16 %v253, %v249
    %v310 = vpack.c.b16 %v258, %v254
    %v311 = vpack.c.b16 %v259, %v255
    %v312 = vpack.c.b16 %v260, %v256
    %v313 = vpack.c.b16 %v261, %v257
    %v314 = vpack.c.b16 %v266, %v262
    %v315 = vpack.c.b16 %v267, %v263
    %v316 = vpack.c.b16 %v268, %v264
    %v317 = vpack.c.b16 %v269, %v265
    %v318 = vpack.c.b16 %v274, %v270
    %v319 = vpack.c.b16 %v275, %v271
    %v320 = vpack.c.b16 %v276, %v272
    %v321 = vpack.c.b16 %v277, %v273
    %v322 = vpack.c.b16 %v282, %v278
    %v323 = vpack.c.b16 %v283, %v279
    %v324 = vpack.c.b16 %v284, %v280
    %v325 = vpack.c.b16 %v285, %v281
    %v326 = vpack.c.b16 %v290, %v286
    %v327 = vpack.c.b16 %v291, %v287
    %v328 = vpack.c.b16 %v292, %v288
    %v329 = vpack.c.b16 %v293, %v289
    %v330 = vpack.c.b16 %v298, %v294
    %v331 = vpack.c.b16 %v299, %v295
    %v332 = vpack.c.b16 %v300, %v296
    %v333 = vpack.c.b16 %v301, %v297
    %v430 = vunpack.c.l.b16 %v142
    %v431 = vunpack.c.l.b16 %v143
    %v432 = vunpack.c.l.b16 %v144
    %v433 = vunpack.c.l.b16 %v145
    %v434 = vunpack.c.l.b16 %v146
    %v435 = vunpack.c.l.b16 %v147
    %v436 = vunpack.c.l.b16 %v148
    %v437 = vunpack.c.l.b16 %v149
    %v438 = vunpack.c.l.b16 %v150
    %v439 = vunpack.c.l.b16 %v151
    %v440 = vunpack.c.l.b16 %v152
    %v441 = vunpack.c.l.b16 %v153
    %v442 = vunpack.c.l.b16 %v154
    %v443 = vunpack.c.l.b16 %v155
    %v444 = vunpack.c.l.b16 %v156
    %v445 = vunpack.c.l.b16 %v157
    %v446 = vunpack.c.l.b16 %v158
    %v447 = vunpack.c.l.b16 %v159
    %v448 = vunpack.c.l.b16 %v160
    %v449 = vunpack.c.l.b16 %v161
    %v450 = vunpack.c.l.b16 %v162
    %v451 = vunpack.c.l.b16 %v163
    %v452 = vunpack.c.l.b16 %v164
    %v453 = vunpack.c.l.b16 %v165
    %v454 = vunpack.c.l.b16 %v166
    %v455 = vunpack.c.l.b16 %v167
    %v456 = vunpack.c.l.b16 %v168
    %v457 = vunpack.c.l.b16 %v169
    %v458 = vunpack.c.l.b16 %v170
    %v459 = vunpack.c.l.b16 %v171
    %v460 = vunpack.c.l.b16 %v172
    %v461 = vunpack.c.l.b16 %v173
    %v462 = vunpack.c.l.b16 %v174
    %v463 = vunpack.c.l.b16 %v175
    %v464 = vunpack.c.l.b16 %v176
    %v465 = vunpack.c.l.b16 %v177
    %v466 = vunpack.c.l.b16 %v178
    %v467 = vunpack.c.l.b16 %v179
    %v468 = vunpack.c.l.b16 %v180
    %v469 = vunpack.c.l.b16 %v181
    %v470 = vunpack.c.l.b16 %v182
    %v471 = vunpack.c.l.b16 %v183
    %v472 = vunpack.c.l.b16 %v184
    %v473 = vunpack.c.l.b16 %v185
    %v474 = vunpack.c.l.b16 %v186
    %v475 = vunpack.c.l.b16 %v187
    %v476 = vunpack.c.l.b16 %v188
    %v477 = vunpack.c.l.b16 %v189
    %v478 = vunpack.c.l.b16 %v190
    %v479 = vunpack.c.l.b16 %v191
    %v480 = vunpack.c.l.b16 %v192
    %v481 = vunpack.c.l.b16 %v193
    %v482 = vunpack.c.l.b16 %v194
    %v483 = vunpack.c.l.b16 %v195
    %v484 = vunpack.c.l.b16 %v196
    %v485 = vunpack.c.l.b16 %v197
    %v486 = vunpack.c.l.b16 %v198
    %v487 = vunpack.c.l.b16 %v199
    %v488 = vunpack.c.l.b16 %v200
    %v489 = vunpack.c.l.b16 %v201
    %v490 = vunpack.c.l.b16 %v202
    %v491 = vunpack.c.l.b16 %v203
    %v492 = vunpack.c.l.b16 %v204
    %v493 = vunpack.c.l.b16 %v205
    %v494 = vpack.c.b16 %v431, %v430
    %v495 = vpack.c.b16 %v433, %v432
    %v496 = vpack.c.b16 %v435, %v434
    %v497 = vpack.c.b16 %v437, %v436
    %v498 = vpack.c.b16 %v439, %v438
    %v499 = vpack.c.b16 %v441, %v440
    %v500 = vpack.c.b16 %v443, %v442
    %v501 = vpack.c.b16 %v445, %v444
    %v502 = vpack.c.b16 %v447, %v446
    %v503 = vpack.c.b16 %v449, %v448
    %v504 = vpack.c.b16 %v451, %v450
    %v505 = vpack.c.b16 %v453, %v452
    %v506 = vpack.c.b16 %v455, %v454
    %v507 = vpack.c.b16 %v457, %v456
    %v508 = vpack.c.b16 %v459, %v458
    %v509 = vpack.c.b16 %v461, %v460
    %v510 = vpack.c.b16 %v463, %v462
    %v511 = vpack.c.b16 %v465, %v464
    %v512 = vpack.c.b16 %v467, %v466
    %v513 = vpack.c.b16 %v469, %v468
    %v514 = vpack.c.b16 %v471, %v470
    %v515 = vpack.c.b16 %v473, %v472
    %v516 = vpack.c.b16 %v475, %v474
    %v517 = vpack.c.b16 %v477, %v476
    %v518 = vpack.c.b16 %v479, %v478
    %v519 = vpack.c.b16 %v481, %v480
    %v520 = vpack.c.b16 %v483, %v482
    %v521 = vpack.c.b16 %v485, %v484
    %v522 = vpack.c.b16 %v487, %v486
    %v523 = vpack.c.b16 %v489, %v488
    %v524 = vpack.c.b16 %v491, %v490
    %v525 = vpack.c.b16 %v493, %v492
    %558 = vmatpush.bf16.msra.mxu0 %v501
    %559 = vmatpush.bf16.msra.mxu0 %v500
    %560 = vmatpush.bf16.msra.mxu0 %v499
    %561 = vmatpush.bf16.msra.mxu0 %v498
    %562 = vmatpush.bf16.msra.mxu0 %v497
    %563 = vmatpush.bf16.msra.mxu0 %v496
    %564 = vmatpush.bf16.msra.mxu0 %v495
    %565 = vmatpush.bf16.msra.mxu0 %v494
    %566 = vmatmul.bf16.gmra.mxu0 %v302
    %v567 = vpop.f32.mrf.mxu0
    %v568 = vadd.f32 0.0, %v567
    %v569 = vpop.f32.mrf.mxu0
    %v570 = vadd.f32 0.0, %v569
    %571 = vmatmul.bf16.gmra.mxu0 %v306
    %v572 = vpop.f32.mrf.mxu0
    %v573 = vadd.f32 0.0, %v572
    %v574 = vpop.f32.mrf.mxu0
    %v575 = vadd.f32 0.0, %v574
    %576 = vmatmul.bf16.gmra.mxu0 %v310
    %v577 = vpop.f32.mrf.mxu0
    %v578 = vadd.f32 0.0, %v577
    %v579 = vpop.f32.mrf.mxu0
    %v580 = vadd.f32 0.0, %v579
    %581 = vmatmul.bf16.gmra.mxu0 %v314
    %v582 = vpop.f32.mrf.mxu0
    %v583 = vadd.f32 0.0, %v582
    %v584 = vpop.f32.mrf.mxu0
    %v585 = vadd.f32 0.0, %v584
    %586 = vmatmul.bf16.gmra.mxu0 %v318
    %v587 = vpop.f32.mrf.mxu0
    %v588 = vadd.f32 0.0, %v587
    %v589 = vpop.f32.mrf.mxu0
    %v590 = vadd.f32 0.0, %v589
    %591 = vmatmul.bf16.gmra.mxu0 %v322
    %v592 = vpop.f32.mrf.mxu0
    %v593 = vadd.f32 0.0, %v592
    %v594 = vpop.f32.mrf.mxu0
    %v595 = vadd.f32 0.0, %v594
    %596 = vmatmul.bf16.gmra.mxu0 %v326
    %v597 = vpop.f32.mrf.mxu0
    %v598 = vadd.f32 0.0, %v597
    %v599 = vpop.f32.mrf.mxu0
    %v600 = vadd.f32 0.0, %v599
    %601 = vmatmul.bf16.gmra.mxu0 %v330
    %v602 = vpop.f32.mrf.mxu0
    %v603 = vadd.f32 0.0, %v602
    %v604 = vpop.f32.mrf.mxu0
    %v605 = vadd.f32 0.0, %v604
    %606 = vdwg.mxu0
    %607 = vmatpush.bf16.msra.mxu0 %v509
    %608 = vmatpush.bf16.msra.mxu0 %v508
    %609 = vmatpush.bf16.msra.mxu0 %v507
    %610 = vmatpush.bf16.msra.mxu0 %v506
    %611 = vmatpush.bf16.msra.mxu0 %v505
    %612 = vmatpush.bf16.msra.mxu0 %v504
    %613 = vmatpush.bf16.msra.mxu0 %v503
    %614 = vmatpush.bf16.msra.mxu0 %v502
    %615 = vmatmul.bf16.gmra.mxu0 %v303
    %v616 = vpop.f32.mrf.mxu0
    %v617 = vadd.f32 %v568, %v616
    %v618 = vpop.f32.mrf.mxu0
    %v619 = vadd.f32 %v570, %v618
    %620 = vmatmul.bf16.gmra.mxu0 %v307
    %v621 = vpop.f32.mrf.mxu0
    %v622 = vadd.f32 %v573, %v621
    %v623 = vpop.f32.mrf.mxu0
    %v624 = vadd.f32 %v575, %v623
    %625 = vmatmul.bf16.gmra.mxu0 %v311
    %v626 = vpop.f32.mrf.mxu0
    %v627 = vadd.f32 %v578, %v626
    %v628 = vpop.f32.mrf.mxu0
    %v629 = vadd.f32 %v580, %v628
    %630 = vmatmul.bf16.gmra.mxu0 %v315
    %v631 = vpop.f32.mrf.mxu0
    %v632 = vadd.f32 %v583, %v631
    %v633 = vpop.f32.mrf.mxu0
    %v634 = vadd.f32 %v585, %v633
    %635 = vmatmul.bf16.gmra.mxu0 %v319
    %v636 = vpop.f32.mrf.mxu0
    %v637 = vadd.f32 %v588, %v636
    %v638 = vpop.f32.mrf.mxu0
    %v639 = vadd.f32 %v590, %v638
    %640 = vmatmul.bf16.gmra.mxu0 %v323
    %v641 = vpop.f32.mrf.mxu0
    %v642 = vadd.f32 %v593, %v641
    %v643 = vpop.f32.mrf.mxu0
    %v644 = vadd.f32 %v595, %v643
    %645 = vmatmul.bf16.gmra.mxu0 %v327
    %v646 = vpop.f32.mrf.mxu0
    %v647 = vadd.f32 %v598, %v646
    %v648 = vpop.f32.mrf.mxu0
    %v649 = vadd.f32 %v600, %v648
    %650 = vmatmul.bf16.gmra.mxu0 %v331
    %v651 = vpop.f32.mrf.mxu0
    %v652 = vadd.f32 %v603, %v651
    %v653 = vpop.f32.mrf.mxu0
    %v654 = vadd.f32 %v605, %v653
    %655 = vdwg.mxu0
    %656 = vmatpush.bf16.msra.mxu0 %v517
    %657 = vmatpush.bf16.msra.mxu0 %v516
    %658 = vmatpush.bf16.msra.mxu0 %v515
    %659 = vmatpush.bf16.msra.mxu0 %v514
    %660 = vmatpush.bf16.msra.mxu0 %v513
    %661 = vmatpush.bf16.msra.mxu0 %v512
    %662 = vmatpush.bf16.msra.mxu0 %v511
    %663 = vmatpush.bf16.msra.mxu0 %v510
    %664 = vmatmul.bf16.gmra.mxu0 %v304
    %v665 = vpop.f32.mrf.mxu0
    %v666 = vadd.f32 %v617, %v665
    %v667 = vpop.f32.mrf.mxu0
    %v668 = vadd.f32 %v619, %v667
    %669 = vmatmul.bf16.gmra.mxu0 %v308
    %v670 = vpop.f32.mrf.mxu0
    %v671 = vadd.f32 %v622, %v670
    %v672 = vpop.f32.mrf.mxu0
    %v673 = vadd.f32 %v624, %v672
    %674 = vmatmul.bf16.gmra.mxu0 %v312
    %v675 = vpop.f32.mrf.mxu0
    %v676 = vadd.f32 %v627, %v675
    %v677 = vpop.f32.mrf.mxu0
    %v678 = vadd.f32 %v629, %v677
    %679 = vmatmul.bf16.gmra.mxu0 %v316
    %v680 = vpop.f32.mrf.mxu0
    %v681 = vadd.f32 %v632, %v680
    %v682 = vpop.f32.mrf.mxu0
    %v683 = vadd.f32 %v634, %v682
    %684 = vmatmul.bf16.gmra.mxu0 %v320
    %v685 = vpop.f32.mrf.mxu0
    %v686 = vadd.f32 %v637, %v685
    %v687 = vpop.f32.mrf.mxu0
    %v688 = vadd.f32 %v639, %v687
    %689 = vmatmul.bf16.gmra.mxu0 %v324
    %v690 = vpop.f32.mrf.mxu0
    %v691 = vadd.f32 %v642, %v690
    %v692 = vpop.f32.mrf.mxu0
    %v693 = vadd.f32 %v644, %v692
    %694 = vmatmul.bf16.gmra.mxu0 %v328
    %v695 = vpop.f32.mrf.mxu0
    %v696 = vadd.f32 %v647, %v695
    %v697 = vpop.f32.mrf.mxu0
    %v698 = vadd.f32 %v649, %v697
    %699 = vmatmul.bf16.gmra.mxu0 %v332
    %v700 = vpop.f32.mrf.mxu0
    %v701 = vadd.f32 %v652, %v700
    %v702 = vpop.f32.mrf.mxu0
    %v703 = vadd.f32 %v654, %v702
    %704 = vdwg.mxu0
    %705 = vmatpush.bf16.msra.mxu0 %v525
    %706 = vmatpush.bf16.msra.mxu0 %v524
    %707 = vmatpush.bf16.msra.mxu0 %v523
    %708 = vmatpush.bf16.msra.mxu0 %v522
    %709 = vmatpush.bf16.msra.mxu0 %v521
    %710 = vmatpush.bf16.msra.mxu0 %v520
    %711 = vmatpush.bf16.msra.mxu0 %v519
    %712 = vmatpush.bf16.msra.mxu0 %v518
    %713 = vmatmul.bf16.gmra.mxu0 %v305
    %v714 = vpop.f32.mrf.mxu0
    %v715 = vadd.f32 %v666, %v714
    %v716 = vpop.f32.mrf.mxu0
    %v717 = vadd.f32 %v668, %v716
    %718 = vmatmul.bf16.gmra.mxu0 %v309
    %v719 = vpop.f32.mrf.mxu0
    %v720 = vadd.f32 %v671, %v719
    %v721 = vpop.f32.mrf.mxu0
    %v722 = vadd.f32 %v673, %v721
    %723 = vmatmul.bf16.gmra.mxu0 %v313
    %v724 = vpop.f32.mrf.mxu0
    %v725 = vadd.f32 %v676, %v724
    %v726 = vpop.f32.mrf.mxu0
    %v727 = vadd.f32 %v678, %v726
    %728 = vmatmul.bf16.gmra.mxu0 %v317
    %v729 = vpop.f32.mrf.mxu0
    %v730 = vadd.f32 %v681, %v729
    %v731 = vpop.f32.mrf.mxu0
    %v732 = vadd.f32 %v683, %v731
    %733 = vmatmul.bf16.gmra.mxu0 %v321
    %v734 = vpop.f32.mrf.mxu0
    %v735 = vadd.f32 %v686, %v734
    %v736 = vpop.f32.mrf.mxu0
    %v737 = vadd.f32 %v688, %v736
    %738 = vmatmul.bf16.gmra.mxu0 %v325
    %v739 = vpop.f32.mrf.mxu0
    %v740 = vadd.f32 %v691, %v739
    %v741 = vpop.f32.mrf.mxu0
    %v742 = vadd.f32 %v693, %v741
    %743 = vmatmul.bf16.gmra.mxu0 %v329
    %v744 = vpop.f32.mrf.mxu0
    %v745 = vadd.f32 %v696, %v744
    %v746 = vpop.f32.mrf.mxu0
    %v747 = vadd.f32 %v698, %v746
    %748 = vmatmul.bf16.gmra.mxu0 %v333
    %v749 = vpop.f32.mrf.mxu0
    %v750 = vadd.f32 %v701, %v749
    %v751 = vpop.f32.mrf.mxu0
    %v752 = vadd.f32 %v703, %v751
    %753 = vdwg.mxu0
    %v754 = vpack.c.bf16 %v715, %v715
    %v755 = vpack.c.bf16 %v717, %v717
    %v756 = vpack.c.bf16 %v720, %v720
    %v757 = vpack.c.bf16 %v722, %v722
    %v758 = vpack.c.bf16 %v725, %v725
    %v759 = vpack.c.bf16 %v727, %v727
    %v760 = vpack.c.bf16 %v730, %v730
    %v761 = vpack.c.bf16 %v732, %v732
    %v762 = vpack.c.bf16 %v735, %v735
    %v763 = vpack.c.bf16 %v737, %v737
    %v764 = vpack.c.bf16 %v740, %v740
    %v765 = vpack.c.bf16 %v742, %v742
    %v766 = vpack.c.bf16 %v745, %v745
    %v767 = vpack.c.bf16 %v747, %v747
    %v768 = vpack.c.bf16 %v750, %v750
    %v769 = vpack.c.bf16 %v752, %v752
    %v770 = vld [vmem:[#allocation4] sm:$0xff]
    %v771 = vld [vmem:[#allocation4 + $0x8] sm:$0xff]
    %v774 = vunpack.c.l.b16 %v754
    %v775 = vunpack.c.l.b16 %v755
    %v776 = vpack.c.b16 %v775, %v774
    %vm778 = vcmask 130048
    %v780 = vsel %vm778, %v776, 0
    %782 = vmatpush.bf16.msra.mxu0 0
    %783 = vmatpush.bf16.msra.mxu0 0
    %784 = vmatpush.bf16.msra.mxu0 0
    %785 = vmatpush.bf16.msra.mxu0 0
    %786 = vmatpush.bf16.msra.mxu0 0
    %787 = vmatpush.bf16.msra.mxu0 0
    %788 = vmatpush.bf16.msra.mxu0 0
    %789 = vmatpush.bf16.msra.mxu0 %v776
    %790 = vmatmul.bf16.gmra.mxu0 %v780
    %v791 = vpop.f32.mrf.mxu0
    %v792 = vadd.f32 %v770, %v791
    %v793 = vpop.f32.mrf.mxu0
    %v794 = vadd.f32 %v771, %v793
    %795 = vdwg.mxu0
    %796 = vst.msk [vmem:[#allocation2] sm:$0xff] %vm778, %v792
    %797 = vst.msk [vmem:[#allocation2 + $0x8] sm:$0xff] %vm778, %v794
    %s798 = scalar_lea.vmem [#allocation4], 16
    %v799 = vld [vmem:[%s798] sm:$0xff]
    %v800 = vld [vmem:[%s798 + $0x8] sm:$0xff]
    %v803 = vunpack.c.l.b16 %v756
    %v804 = vunpack.c.l.b16 %v757
    %v805 = vpack.c.b16 %v804, %v803
    %v808 = vsel %vm778, %v805, 0
    %810 = vmatpush.bf16.msra.mxu0 0
    %811 = vmatpush.bf16.msra.mxu0 0
    %812 = vmatpush.bf16.msra.mxu0 0
    %813 = vmatpush.bf16.msra.mxu0 0
    %814 = vmatpush.bf16.msra.mxu0 0
    %815 = vmatpush.bf16.msra.mxu0 0
    %816 = vmatpush.bf16.msra.mxu0 0
    %817 = vmatpush.bf16.msra.mxu0 %v805
    %818 = vmatmul.bf16.gmra.mxu0 %v808
    %v819 = vpop.f32.mrf.mxu0
    %v820 = vadd.f32 %v799, %v819
    %v821 = vpop.f32.mrf.mxu0
    %v822 = vadd.f32 %v800, %v821
    %823 = vdwg.mxu0
    %s824 = scalar_lea.vmem [#allocation2], 16
    %825 = vst.msk [vmem:[%s824] sm:$0xff] %vm778, %v820
    %826 = vst.msk [vmem:[%s824 + $0x8] sm:$0xff] %vm778, %v822
    %s827 = scalar_lea.vmem [#allocation4], 32
    %v828 = vld [vmem:[%s827] sm:$0xff]
    %v829 = vld [vmem:[%s827 + $0x8] sm:$0xff]
    %v832 = vunpack.c.l.b16 %v758
    %v833 = vunpack.c.l.b16 %v759
    %v834 = vpack.c.b16 %v833, %v832
    %v837 = vsel %vm778, %v834, 0
    %839 = vmatpush.bf16.msra.mxu0 0
    %840 = vmatpush.bf16.msra.mxu0 0
    %841 = vmatpush.bf16.msra.mxu0 0
    %842 = vmatpush.bf16.msra.mxu0 0
    %843 = vmatpush.bf16.msra.mxu0 0
    %844 = vmatpush.bf16.msra.mxu0 0
    %845 = vmatpush.bf16.msra.mxu0 0
    %846 = vmatpush.bf16.msra.mxu0 %v834
    %847 = vmatmul.bf16.gmra.mxu0 %v837
    %v848 = vpop.f32.mrf.mxu0
    %v849 = vadd.f32 %v828, %v848
    %v850 = vpop.f32.mrf.mxu0
    %v851 = vadd.f32 %v829, %v850
    %852 = vdwg.mxu0
    %s853 = scalar_lea.vmem [#allocation2], 32
    %854 = vst.msk [vmem:[%s853] sm:$0xff] %vm778, %v849
    %855 = vst.msk [vmem:[%s853 + $0x8] sm:$0xff] %vm778, %v851
    %s856 = scalar_lea.vmem [#allocation4], 48
    %v857 = vld [vmem:[%s856] sm:$0xff]
    %v858 = vld [vmem:[%s856 + $0x8] sm:$0xff]
    %v861 = vunpack.c.l.b16 %v760
    %v862 = vunpack.c.l.b16 %v761
    %v863 = vpack.c.b16 %v862, %v861
    %v866 = vsel %vm778, %v863, 0
    %868 = vmatpush.bf16.msra.mxu0 0
    %869 = vmatpush.bf16.msra.mxu0 0
    %870 = vmatpush.bf16.msra.mxu0 0
    %871 = vmatpush.bf16.msra.mxu0 0
    %872 = vmatpush.bf16.msra.mxu0 0
    %873 = vmatpush.bf16.msra.mxu0 0
    %874 = vmatpush.bf16.msra.mxu0 0
    %875 = vmatpush.bf16.msra.mxu0 %v863
    %876 = vmatmul.bf16.gmra.mxu0 %v866
    %v877 = vpop.f32.mrf.mxu0
    %v878 = vadd.f32 %v857, %v877
    %v879 = vpop.f32.mrf.mxu0
    %v880 = vadd.f32 %v858, %v879
    %881 = vdwg.mxu0
    %s882 = scalar_lea.vmem [#allocation2], 48
    %883 = vst.msk [vmem:[%s882] sm:$0xff] %vm778, %v878
    %884 = vst.msk [vmem:[%s882 + $0x8] sm:$0xff] %vm778, %v880
    %s885 = scalar_lea.vmem [#allocation4], 64
    %v886 = vld [vmem:[%s885] sm:$0xff]
    %v887 = vld [vmem:[%s885 + $0x8] sm:$0xff]
    %v890 = vunpack.c.l.b16 %v762
    %v891 = vunpack.c.l.b16 %v763
    %v892 = vpack.c.b16 %v891, %v890
    %v895 = vsel %vm778, %v892, 0
    %897 = vmatpush.bf16.msra.mxu0 0
    %898 = vmatpush.bf16.msra.mxu0 0
    %899 = vmatpush.bf16.msra.mxu0 0
    %900 = vmatpush.bf16.msra.mxu0 0
    %901 = vmatpush.bf16.msra.mxu0 0
    %902 = vmatpush.bf16.msra.mxu0 0
    %903 = vmatpush.bf16.msra.mxu0 0
    %904 = vmatpush.bf16.msra.mxu0 %v892
    %905 = vmatmul.bf16.gmra.mxu0 %v895
    %v906 = vpop.f32.mrf.mxu0
    %v907 = vadd.f32 %v886, %v906
    %v908 = vpop.f32.mrf.mxu0
    %v909 = vadd.f32 %v887, %v908
    %910 = vdwg.mxu0
    %s911 = scalar_lea.vmem [#allocation2], 64
    %912 = vst.msk [vmem:[%s911] sm:$0xff] %vm778, %v907
    %913 = vst.msk [vmem:[%s911 + $0x8] sm:$0xff] %vm778, %v909
    %s914 = scalar_lea.vmem [#allocation4], 80
    %v915 = vld [vmem:[%s914] sm:$0xff]
    %v916 = vld [vmem:[%s914 + $0x8] sm:$0xff]
    %v919 = vunpack.c.l.b16 %v764
    %v920 = vunpack.c.l.b16 %v765
    %v921 = vpack.c.b16 %v920, %v919
    %v924 = vsel %vm778, %v921, 0
    %926 = vmatpush.bf16.msra.mxu0 0
    %927 = vmatpush.bf16.msra.mxu0 0
    %928 = vmatpush.bf16.msra.mxu0 0
    %929 = vmatpush.bf16.msra.mxu0 0
    %930 = vmatpush.bf16.msra.mxu0 0
    %931 = vmatpush.bf16.msra.mxu0 0
    %932 = vmatpush.bf16.msra.mxu0 0
    %933 = vmatpush.bf16.msra.mxu0 %v921
    %934 = vmatmul.bf16.gmra.mxu0 %v924
    %v935 = vpop.f32.mrf.mxu0
    %v936 = vadd.f32 %v915, %v935
    %v937 = vpop.f32.mrf.mxu0
    %v938 = vadd.f32 %v916, %v937
    %939 = vdwg.mxu0
    %s940 = scalar_lea.vmem [#allocation2], 80
    %941 = vst.msk [vmem:[%s940] sm:$0xff] %vm778, %v936
    %942 = vst.msk [vmem:[%s940 + $0x8] sm:$0xff] %vm778, %v938
    %s943 = scalar_lea.vmem [#allocation4], 96
    %v944 = vld [vmem:[%s943] sm:$0xff]
    %v945 = vld [vmem:[%s943 + $0x8] sm:$0xff]
    %v948 = vunpack.c.l.b16 %v766
    %v949 = vunpack.c.l.b16 %v767
    %v950 = vpack.c.b16 %v949, %v948
    %v953 = vsel %vm778, %v950, 0
    %955 = vmatpush.bf16.msra.mxu0 0
    %956 = vmatpush.bf16.msra.mxu0 0
    %957 = vmatpush.bf16.msra.mxu0 0
    %958 = vmatpush.bf16.msra.mxu0 0
    %959 = vmatpush.bf16.msra.mxu0 0
    %960 = vmatpush.bf16.msra.mxu0 0
    %961 = vmatpush.bf16.msra.mxu0 0
    %962 = vmatpush.bf16.msra.mxu0 %v950
    %963 = vmatmul.bf16.gmra.mxu0 %v953
    %v964 = vpop.f32.mrf.mxu0
    %v965 = vadd.f32 %v944, %v964
    %v966 = vpop.f32.mrf.mxu0
    %v967 = vadd.f32 %v945, %v966
    %968 = vdwg.mxu0
    %s969 = scalar_lea.vmem [#allocation2], 96
    %970 = vst.msk [vmem:[%s969] sm:$0xff] %vm778, %v965
    %971 = vst.msk [vmem:[%s969 + $0x8] sm:$0xff] %vm778, %v967
    %s972 = scalar_lea.vmem [#allocation4], 112
    %v973 = vld [vmem:[%s972] sm:$0xff]
    %v974 = vld [vmem:[%s972 + $0x8] sm:$0xff]
    %v977 = vunpack.c.l.b16 %v768
    %v978 = vunpack.c.l.b16 %v769
    %v979 = vpack.c.b16 %v978, %v977
    %v982 = vsel %vm778, %v979, 0
    %984 = vmatpush.bf16.msra.mxu0 0
    %985 = vmatpush.bf16.msra.mxu0 0
    %986 = vmatpush.bf16.msra.mxu0 0
    %987 = vmatpush.bf16.msra.mxu0 0
    %988 = vmatpush.bf16.msra.mxu0 0
    %989 = vmatpush.bf16.msra.mxu0 0
    %990 = vmatpush.bf16.msra.mxu0 0
    %991 = vmatpush.bf16.msra.mxu0 %v979
    %992 = vmatmul.bf16.gmra.mxu0 %v982
    %v993 = vpop.f32.mrf.mxu0
    %v994 = vadd.f32 %v973, %v993
    %v995 = vpop.f32.mrf.mxu0
    %v996 = vadd.f32 %v974, %v995
    %997 = vdwg.mxu0
    %s998 = scalar_lea.vmem [#allocation2], 112
    %999 = vst.msk [vmem:[%s998] sm:$0xff] %vm778, %v994
    %1000 = vst.msk [vmem:[%s998 + $0x8] sm:$0xff] %vm778, %v996
    // Predicated region
    $region14: #{model_forward.2} parent=1 // pred_check
      _
    $region15: #{model_forward.2} parent=1 // pred_check_branch
      %1002 = sbr.rel (0) target = $region17
    $region16: #{model_forward.2} parent=1 // pred_region
      %1004 = vsyncadd [#allocation3], 0
      %s1005 = sshll.u32 [#allocation2], 4
      %s1006 = int_to_ptr.vmem [resolvable:$true] %s1005
      %s1007 = sshll.u32 %s3, 4
      %s1008 = int_to_ptr.hbm [resolvable:$true] %s1007
      %1013 = dma.vmem_to_hbm [thread:$0]  %s1006, 2048, %s1008, [#allocation3], 128, 128, 8
    $region17: #{model_forward.2} parent=1 // pred_fallthru
      _
    // Predicated region
    $region18: #{model_forward.2} parent=1 // pred_check
      _
    $region19: #{model_forward.2} parent=1 // pred_check_branch
      %1015 = sbr.rel (0) target = $region21
    $region20: #{model_forward.2} parent=1 // pred_region
      %1017 = dma.done [#allocation3], 2048
    $region21: #{model_forward.2} parent=1 // pred_fallthru
      _
    %1018 = vsyncpa [#allocation3], 1

</llo_original>
